<compile_context>
chip_gen: v5e
topology: v5e:2x2
jax: 0.10.0
libtpu: 0.0.40
codegen_flags: <defaults>
</compile_context>

<pallas_src>
import functools

import jax
import jax.numpy as jnp
from jax.experimental import pallas as pl
from jax.experimental.pallas import tpu as pltpu


def _fused_mse_kernel(*refs, n_out):
    t_ref = refs[0]
    out_refs = refs[1:1 + n_out]
    loss_ref = refs[1 + n_out]          # (1, 1) SMEM output block (per core)
    acc_ref = refs[2 + n_out]           # (1, lanes) VMEM vector accumulator

    i = pl.program_id(1)

    @pl.when(i == 0)
    def _():
        acc_ref[...] = jnp.zeros_like(acc_ref)

    t = t_ref[...].astype(jnp.float32)
    acc = acc_ref[...]
    for o_ref in out_refs:              # unrolled at trace time (K is small)
        d = t - o_ref[...].astype(jnp.float32)
        acc = acc + jnp.sum(d * d, axis=0, keepdims=True)
    acc_ref[...] = acc

    @pl.when(i == pl.num_programs(1) - 1)
    def _():
        loss_ref[0, 0] = jnp.sum(acc_ref[...])


def _device_config():
    """(ncores, input_budget_bytes, tm_cap, vmem_limit_bytes) per TPU gen."""
    try:
        kind = jax.devices()[0].device_kind.lower()
    except Exception:
        kind = ""
    if "v7" in kind:
        return 2, 24 * 1024 * 1024, 2048, 48 * 1024 * 1024
    return 1, 8 * 1024 * 1024, 512, 32 * 1024 * 1024


def _pick_lanes(total):
    for lanes in (512, 256, 128):
        if total % lanes == 0:
            return lanes
    return None


@jax.jit
def regression_loss(targets, *outputs):
    """MSE regression loss: sum_k mean((targets - outputs[k]) ** 2)."""
    for o in outputs:
        assert o.shape == targets.shape

    total = targets.size
    n_out = len(outputs)
    if n_out == 0 or total == 0:
        return jnp.float32(0.0)
    n_arrays = 1 + n_out
    itemsize = targets.dtype.itemsize
    row_align = max(8, 32 // itemsize)   # sublane packing: 8 f32 / 16 bf16 / 32 8-bit

    flats = [targets.reshape(-1)] + [o.reshape(-1) for o in outputs]
    lanes = _pick_lanes(total)

    if lanes is None:
        # TODO(synk): element count not a multiple of 128 -> no free lane-dense
        # reshape exists; fall back to plain JAX for this (rare) shape.
        t = flats[0].astype(jnp.float32)
        sq = jnp.float32(0.0)
        for f in flats[1:]:
            d = t - f.astype(jnp.float32)
            sq = sq + jnp.sum(d * d)
        return sq / jnp.float32(total)

    m = total // lanes
    slabs = [f.reshape(m, lanes) for f in flats]      # free bitcast, no copy

    ncores, budget, tm_cap, vmem_limit = _device_config()

    if m < row_align:
        # Tiny input: one full-array block (block == full array dims is allowed).
        ncores, tm = 1, m
    else:
        if m // ncores < row_align:
            ncores = 1
        tm = budget // (n_arrays * 2 * lanes * itemsize)
        tm = min(tm, tm_cap, m // ncores)
        tm = max(row_align, (tm // row_align) * row_align)

    inner = max(1, m // (ncores * tm))
    m_main = ncores * inner * tm          # rows covered exactly by the grid

    in_spec = pl.BlockSpec((tm, lanes), lambda c, i: (c * inner + i, 0))
    partials = pl.pallas_call(
        functools.partial(_fused_mse_kernel, n_out=n_out),
        out_shape=jax.ShapeDtypeStruct((ncores, 1), jnp.float32),
        grid_spec=pltpu.PrefetchScalarGridSpec(
            num_scalar_prefetch=0,
            grid=(ncores, inner),
            in_specs=[in_spec] * n_arrays,
            out_specs=pl.BlockSpec((1, 1), lambda c, i: (c, 0),
                                   memory_space=pltpu.MemorySpace.SMEM),
            scratch_shapes=[pltpu.VMEM((1, lanes), jnp.float32)],
        ),
        compiler_params=pltpu.CompilerParams(
            dimension_semantics=("parallel", "arbitrary"),
            vmem_limit_bytes=vmem_limit,
        ),
        cost_estimate=pl.CostEstimate(
            flops=3 * n_out * m_main * lanes,
            transcendentals=0,
            bytes_accessed=n_arrays * m_main * lanes * itemsize,
        ),
    )(*slabs)

    sq = jnp.sum(partials)

    # Sub-tile row remainder (< ncores*tm rows): plain JAX, added to the kernel
    # partial sum.  Keeps the kernel path copy-free and OOB-free.
    if m_main < m:
        t_rem = slabs[0][m_main:, :].astype(jnp.float32)
        for s in slabs[1:]:
            d = t_rem - s[m_main:, :].astype(jnp.float32)
            sq = sq + jnp.sum(d * d)

    return sq / jnp.float32(total)


if __name__ == "__main__":
    key = jax.random.PRNGKey(0)
    k1, k2, k3 = jax.random.split(key, 3)

    # NCHW, small shapes
    B, C, H, W = 2, 4, 16, 16
    targets = jax.random.normal(k1, (B, C, H, W), dtype=jnp.float32)
    out_a = jax.random.normal(k2, (B, C, H, W), dtype=jnp.float32)
    out_b = jax.random.normal(k3, (B, C, H, W), dtype=jnp.float32)

    loss = regression_loss(targets, out_a, out_b)
    loss = jax.block_until_ready(loss)

    # pure-JAX reference check
    ref = jnp.mean((targets - out_a) ** 2) + jnp.mean((targets - out_b) ** 2)
    assert jnp.allclose(loss, ref, rtol=1e-5, atol=1e-5), (loss, ref)

    print("KERNEL_OK")
</pallas_src>

<mosaic_0001>
module attributes {stable_mosaic.version = 11 : i64} {
  func.func @_fused_mse_kernel(%arg0: i32, %arg1: i32, %arg2: memref<4x512xf32, #tpu.memory_space<vmem>>, %arg3: memref<4x512xf32, #tpu.memory_space<vmem>>, %arg4: memref<4x512xf32, #tpu.memory_space<vmem>>, %arg5: memref<1x1xf32, #tpu.memory_space<smem>>, %arg6: memref<1x512xf32, #tpu.memory_space<vmem>>) attributes {dimension_semantics = [#tpu.dimension_semantics<parallel>, #tpu.dimension_semantics<arbitrary>], iteration_bounds = array<i64: 1, 1>, scalar_prefetch = 0 : i64, scratch_operands = 1 : i64, tpu.core_type = #tpu.core_type<tc>, window_params = [{transform_indices = @transform_0, window_bounds = array<i64: 4, 512>}, {transform_indices = @transform_1, window_bounds = array<i64: 4, 512>}, {transform_indices = @transform_2, window_bounds = array<i64: 4, 512>}, {transform_indices = @transform_3, window_bounds = array<i64: 1, 1>}]} {
    %c0_i32 = arith.constant 0 : i32
    %0 = arith.cmpi eq, %arg1, %c0_i32 : i32
    %1 = arith.extui %0 : i1 to i32
    %c0_i32_0 = arith.constant 0 : i32
    %2 = arith.cmpi ne, %1, %c0_i32_0 : i32
    scf.if %2 {
      %cst_13 = arith.constant 0.000000e+00 : f32
      %21 = vector.broadcast %cst_13 : f32 to vector<1x512xf32>
      %c0_14 = arith.constant 0 : index
      %c0_15 = arith.constant 0 : index
      %22 = vector.load %arg6[%c0_14, %c0_15] : memref<1x512xf32, #tpu.memory_space<vmem>>, vector<1x512xf32>
      tpu.vector_store %arg6[%c0_14, %c0_15], %21 {strides = array<i32>} : memref<1x512xf32, #tpu.memory_space<vmem>>, vector<1x512xf32>,
    } else {
    }
    %c0 = arith.constant 0 : index
    %c0_1 = arith.constant 0 : index
    %3 = vector.load %arg2[%c0, %c0_1] : memref<4x512xf32, #tpu.memory_space<vmem>>, vector<4x512xf32>
    %c0_2 = arith.constant 0 : index
    %c0_3 = arith.constant 0 : index
    %4 = vector.load %arg6[%c0_2, %c0_3] : memref<1x512xf32, #tpu.memory_space<vmem>>, vector<1x512xf32>
    %c0_4 = arith.constant 0 : index
    %c0_5 = arith.constant 0 : index
    %5 = vector.load %arg3[%c0_4, %c0_5] : memref<4x512xf32, #tpu.memory_space<vmem>>, vector<4x512xf32>
    %6 = arith.subf %3, %5 : vector<4x512xf32>
    %7 = arith.mulf %6, %6 : vector<4x512xf32>
    %cst = arith.constant dense<0.000000e+00> : vector<512xf32>
    %8 = vector.multi_reduction <add>, %7, %cst [0] : vector<4x512xf32> to vector<512xf32>
    %9 = vector.shape_cast %8 : vector<512xf32> to vector<1x512xf32>
    %10 = arith.addf %4, %9 : vector<1x512xf32>
    %c0_6 = arith.constant 0 : index
    %c0_7 = arith.constant 0 : index
    %11 = vector.load %arg4[%c0_6, %c0_7] : memref<4x512xf32, #tpu.memory_space<vmem>>, vector<4x512xf32>
    %12 = arith.subf %3, %11 : vector<4x512xf32>
    %13 = arith.mulf %12, %12 : vector<4x512xf32>
    %cst_8 = arith.constant dense<0.000000e+00> : vector<512xf32>
    %14 = vector.multi_reduction <add>, %13, %cst_8 [0] : vector<4x512xf32> to vector<512xf32>
    %15 = vector.shape_cast %14 : vector<512xf32> to vector<1x512xf32>
    %16 = arith.addf %10, %15 : vector<1x512xf32>
    %c0_9 = arith.constant 0 : index
    %c0_10 = arith.constant 0 : index
    %17 = vector.load %arg6[%c0_9, %c0_10] : memref<1x512xf32, #tpu.memory_space<vmem>>, vector<1x512xf32>
    tpu.vector_store %arg6[%c0_9, %c0_10], %16 {strides = array<i32>} : memref<1x512xf32, #tpu.memory_space<vmem>>, vector<1x512xf32>,
    %c0_i32_11 = arith.constant 0 : i32
    %18 = arith.cmpi eq, %arg1, %c0_i32_11 : i32
    %19 = arith.extui %18 : i1 to i32
    %c0_i32_12 = arith.constant 0 : i32
    %20 = arith.cmpi ne, %19, %c0_i32_12 : i32
    scf.if %20 {
      %c0_13 = arith.constant 0 : index
      %c0_14 = arith.constant 0 : index
      %21 = vector.load %arg6[%c0_13, %c0_14] : memref<1x512xf32, #tpu.memory_space<vmem>>, vector<1x512xf32>
      %22 = vector.shape_cast %21 : vector<1x512xf32> to vector<1x1x512xf32>
      %cst_15 = arith.constant dense<0.000000e+00> : vector<1xf32>
      %23 = vector.multi_reduction <add>, %22, %cst_15 [1, 2] : vector<1x1x512xf32> to vector<1xf32>
      %24 = vector.shape_cast %23 : vector<1xf32> to vector<1x1x1xf32>
      %25 = vector.extract %24[0, 0, 0] : f32 from vector<1x1x1xf32>
      %c0_16 = arith.constant 0 : index
      %c0_17 = arith.constant 0 : index
      %26 = memref.load %arg5[%c0_16, %c0_17] : memref<1x1xf32, #tpu.memory_space<smem>>
      memref.store %25, %arg5[%c0_16, %c0_17] : memref<1x1xf32, #tpu.memory_space<smem>>
    } else {
    }
    return
  }
  func.func @transform_0(%arg0: i32, %arg1: i32) -> (i32, i32) {
    %c1_i32 = arith.constant 1 : i32
    %0 = arith.muli %arg0, %c1_i32 : i32
    %1 = arith.addi %0, %arg1 : i32
    %c0_i32 = arith.constant 0 : i32
    %c0_i32_0 = arith.constant 0 : i32
    return %1, %c0_i32 : i32, i32
  }
  func.func @transform_1(%arg0: i32, %arg1: i32) -> (i32, i32) {
    %c1_i32 = arith.constant 1 : i32
    %0 = arith.muli %arg0, %c1_i32 : i32
    %1 = arith.addi %0, %arg1 : i32
    %c0_i32 = arith.constant 0 : i32
    %c0_i32_0 = arith.constant 0 : i32
    return %1, %c0_i32 : i32, i32
  }
  func.func @transform_2(%arg0: i32, %arg1: i32) -> (i32, i32) {
    %c1_i32 = arith.constant 1 : i32
    %0 = arith.muli %arg0, %c1_i32 : i32
    %1 = arith.addi %0, %arg1 : i32
    %c0_i32 = arith.constant 0 : i32
    %c0_i32_0 = arith.constant 0 : i32
    return %1, %c0_i32 : i32, i32
  }
  func.func @transform_3(%arg0: i32, %arg1: i32) -> (i32, i32) {
    %c0_i32 = arith.constant 0 : i32
    %c0_i32_0 = arith.constant 0 : i32
    return %arg0, %c0_i32 : i32, i32
  }
}

</mosaic_0001>

<llo_original>
// kernel: regression_loss.1
$region0: #{regression_loss.1}
  #allocation0 [shape = 'u32[]', space=smem, size = 0x4, offset = 0x4, fixed_abs, tag = 'smem constant byte address 0x4 - core index']
  #allocation1 [shape = 'u32[72,128]{1,0:T(1,128)}', space=vmem, size = 0x9000, scoped, tag = 'internal scratch']
  #allocation2 [shape = 'f32[1,512]{1,0:T(1,128)}', space=vmem, size = 0x800, scoped, tag = 'scratch operand']
  %s0 = inlined_call_operand.vmem [shape: f32[4,512], index: 0, kind: input, shape index: {}]
  %s1 = inlined_call_operand.vmem [shape: f32[4,512], index: 1, kind: input, shape index: {}]
  %s2 = inlined_call_operand.vmem [shape: f32[4,512], index: 2, kind: input, shape index: {}]
  %s3 = inlined_call_operand.hbm [shape: f32[1,1], index: 3, kind: output, shape index: {}]
  %s4 = sld [smem:[#allocation0]]
  $region30: #{regression_loss.1} parent=0
    _
  %s6 = ssub.s32 1, %s4
  %s7 = scalar_select 0, %s6, %s4
  $region1: #{regression_loss.1} parent=0
    #allocation3 [shape = 'u8[512]{0}', space=smem, size = 0x200, scoped, tag = 'output window, operand 0, single buffered']
    #allocation4 [shape = 's32[1]{0}', space=sflag, size = 0x4, scoped, tag = 'scoped memory for regression_loss.1']
    %8 = vsyncpa [#allocation4], 0
    // Predicated region
    $region2: #{regression_loss.1} parent=1 // pred_check
      _
    $region3: #{regression_loss.1} parent=1 // pred_check_branch
      %10 = sbr.rel (0) target = $region5
    $region4: #{regression_loss.1} parent=1 // pred_region
      %s11 = sadd.s32 0, 0
      %p12 = scmp.lt.s32.totalorder %s11, 0
      %s13 = scalar_select %p12, %s11, 0
      %s14 = smul.addr %s13, 4
      %s15 = smul.addr %s14, 4
      %s16 = scalar_lea.vmem %s0, %s15
      %s17 = sadd.s32 0, 0
    $region5: #{regression_loss.1} parent=1 // pred_fallthru
      _
    // Predicated region
    $region6: #{regression_loss.1} parent=1 // pred_check
      _
    $region7: #{regression_loss.1} parent=1 // pred_check_branch
      %19 = sbr.rel (0) target = $region9
    $region8: #{regression_loss.1} parent=1 // pred_region
      %s20 = sadd.s32 0, 0
      %p21 = scmp.lt.s32.totalorder %s20, 0
      %s22 = scalar_select %p21, %s20, 0
      %s23 = smul.addr %s22, 4
      %s24 = smul.addr %s23, 4
      %s25 = scalar_lea.vmem %s1, %s24
      %s26 = sadd.s32 0, 0
    $region9: #{regression_loss.1} parent=1 // pred_fallthru
      _
    // Predicated region
    $region10: #{regression_loss.1} parent=1 // pred_check
      _
    $region11: #{regression_loss.1} parent=1 // pred_check_branch
      %28 = sbr.rel (0) target = $region13
    $region12: #{regression_loss.1} parent=1 // pred_region
      %s29 = sadd.s32 0, 0
      %p30 = scmp.lt.s32.totalorder %s29, 0
      %s31 = scalar_select %p30, %s29, 0
      %s32 = smul.addr %s31, 4
      %s33 = smul.addr %s32, 4
      %s34 = scalar_lea.vmem %s2, %s33
      %s35 = sadd.s32 0, 0
    $region13: #{regression_loss.1} parent=1 // pred_fallthru
      _
    %s36 = sadd.s32 0, 0
    %p37 = scmp.lt.s32.totalorder %s36, 0
    %s38 = scalar_select %p37, %s36, 0
    %s39 = smul.addr %s38, 4
    %s40 = smul.addr %s39, 4
    %s41 = scalar_lea.vmem %s0, %s40
    %s42 = sadd.s32 0, 0
    %p43 = scmp.lt.s32.totalorder %s42, 0
    %s44 = scalar_select %p43, %s42, 0
    %s45 = smul.addr %s44, 4
    %s46 = smul.addr %s45, 4
    %s47 = scalar_lea.vmem %s1, %s46
    %s48 = sadd.s32 0, 0
    %p49 = scmp.lt.s32.totalorder %s48, 0
    %s50 = scalar_select %p49, %s48, 0
    %s51 = smul.addr %s50, 4
    %s52 = smul.addr %s51, 4
    %s53 = scalar_lea.vmem %s2, %s52
    %s54 = sadd.s32 0, 0
    %p55 = scmp.lt.s32.totalorder %s54, 0
    %s56 = scalar_select %p55, %s54, 0
    %s57 = smul.addr %s56, 4
    %s58 = smul.addr %s57, 4
    %s59 = scalar_lea.vmem %s0, %s58
    %s60 = sadd.s32 0, 0
    %s61 = sadd.s32 0, 0
    %p62 = scmp.lt.s32.totalorder %s61, 0
    %s63 = scalar_select %p62, %s61, 0
    %s64 = smul.addr %s63, 4
    %s65 = smul.addr %s64, 4
    %s66 = scalar_lea.vmem %s1, %s65
    %s67 = sadd.s32 0, 0
    %s68 = sadd.s32 0, 0
    %p69 = scmp.lt.s32.totalorder %s68, 0
    %s70 = scalar_select %p69, %s68, 0
    %s71 = smul.addr %s70, 4
    %s72 = smul.addr %s71, 4
    %s73 = scalar_lea.vmem %s2, %s72
    %s74 = sadd.s32 0, 0
    %p75 = scmp.eq.s32.totalorder 0, 0
    // Predicated region
    $region14: #{regression_loss.1} parent=1 // pred_check
      %p76 = pneg %p75
    $region15: #{regression_loss.1} parent=1 // pred_check_branch
      %78 = sbr.rel (%p76) target = $region17
    $region16: #{regression_loss.1} parent=1 // pred_region
      %v79 = vlaneseq
      %vm80 = vcmp.ge.s32.totalorder %v79, 0
      %vm81 = vcmp.lt.s32.totalorder %v79, 512
      %vm82 = vmand %vm80, %vm81
      %83 = vst.msk [vmem:[#allocation2] sm:$0xf] %vm82, 0.0
    $region17: #{regression_loss.1} parent=1 // pred_fallthru
      _
    %v84 = vld [vmem:[%s59] sm:$0xff]
    %v85 = vld [vmem:[%s59 + $0x8] sm:$0xff]
    %v86 = vld [vmem:[#allocation2] sm:$0xf]
    %v87 = vld [vmem:[%s66] sm:$0xff]
    %v88 = vld [vmem:[%s66 + $0x8] sm:$0xff]
    %v89 = vsub.f32 %v84, %v87
    %v90 = vsub.f32 %v85, %v88
    %v91 = vmul.f32 %v89, %v89
    %v92 = vmul.f32 %v90, %v90
    %95 = vst [vmem:[#allocation1] ss:$2 sm:$0xff] %v91
    %s96 = scalar_lea.vmem [#allocation1], 16
    %97 = vst [vmem:[%s96] ss:$2 sm:$0xff] %v92
    %v98 = vld.sshfl [vmem:[#allocation1] sm:$0xff pattern:$0x75316420]
    %v99 = vld.sshfl [vmem:[#allocation1 + $0x8] sm:$0xff pattern:$0x75316420]
    %v100 = vld.sshfl [vmem:[#allocation1 + $0x10] sm:$0xff pattern:$0x75316420]
    %v101 = vld.sshfl [vmem:[#allocation1 + $0x18] sm:$0xff pattern:$0x75316420]
    %vm106 = vcmask 1043456
    %v107 = vsel %vm106, %v98, 0.0
    %v108 = vrot.slane %v107, 4
    %v109 = vadd.f32 %v107, %v108
    %v110 = vrot.slane %v109, 2
    %v111 = vadd.f32 %v109, %v110
    %v112 = vrot.slane %v111, 1
    %v113 = vadd.f32 %v111, %v112
    %v114 = vsel %vm106, %v99, 0.0
    %v115 = vrot.slane %v114, 4
    %v116 = vadd.f32 %v114, %v115
    %v117 = vrot.slane %v116, 2
    %v118 = vadd.f32 %v116, %v117
    %v119 = vrot.slane %v118, 1
    %v120 = vadd.f32 %v118, %v119
    %v121 = vsel %vm106, %v100, 0.0
    %v122 = vrot.slane %v121, 4
    %v123 = vadd.f32 %v121, %v122
    %v124 = vrot.slane %v123, 2
    %v125 = vadd.f32 %v123, %v124
    %v126 = vrot.slane %v125, 1
    %v127 = vadd.f32 %v125, %v126
    %v128 = vsel %vm106, %v101, 0.0
    %v129 = vrot.slane %v128, 4
    %v130 = vadd.f32 %v128, %v129
    %v131 = vrot.slane %v130, 2
    %v132 = vadd.f32 %v130, %v131
    %v133 = vrot.slane %v132, 1
    %v134 = vadd.f32 %v132, %v133
    %v139 = vrot.slane %v120, 7
    %v140 = vrot.slane %v127, 6
    %v141 = vrot.slane %v134, 5
    %vm142 = vcmask 1040384
    %v143 = vsel %vm142, %v113, %v139
    %vm144 = vcmask 1042434
    %v145 = vsel %vm144, %v140, %v141
    %vm146 = vcmask 1041408
    %v147 = vsel %vm146, %v143, %v145
    %v149 = vadd.f32 %v86, %v147
    %v150 = vld [vmem:[%s73] sm:$0xff]
    %v151 = vld [vmem:[%s73 + $0x8] sm:$0xff]
    %v152 = vsub.f32 %v84, %v150
    %v153 = vsub.f32 %v85, %v151
    %v154 = vmul.f32 %v152, %v152
    %v155 = vmul.f32 %v153, %v153
    %158 = vst [vmem:[#allocation1] ss:$2 sm:$0xff] %v154
    %s159 = scalar_lea.vmem [#allocation1], 16
    %160 = vst [vmem:[%s159] ss:$2 sm:$0xff] %v155
    %v161 = vld.sshfl [vmem:[#allocation1] sm:$0xff pattern:$0x75316420]
    %v162 = vld.sshfl [vmem:[#allocation1 + $0x8] sm:$0xff pattern:$0x75316420]
    %v163 = vld.sshfl [vmem:[#allocation1 + $0x10] sm:$0xff pattern:$0x75316420]
    %v164 = vld.sshfl [vmem:[#allocation1 + $0x18] sm:$0xff pattern:$0x75316420]
    %v169 = vsel %vm106, %v161, 0.0
    %v170 = vrot.slane %v169, 4
    %v171 = vadd.f32 %v169, %v170
    %v172 = vrot.slane %v171, 2
    %v173 = vadd.f32 %v171, %v172
    %v174 = vrot.slane %v173, 1
    %v175 = vadd.f32 %v173, %v174
    %v176 = vsel %vm106, %v162, 0.0
    %v177 = vrot.slane %v176, 4
    %v178 = vadd.f32 %v176, %v177
    %v179 = vrot.slane %v178, 2
    %v180 = vadd.f32 %v178, %v179
    %v181 = vrot.slane %v180, 1
    %v182 = vadd.f32 %v180, %v181
    %v183 = vsel %vm106, %v163, 0.0
    %v184 = vrot.slane %v183, 4
    %v185 = vadd.f32 %v183, %v184
    %v186 = vrot.slane %v185, 2
    %v187 = vadd.f32 %v185, %v186
    %v188 = vrot.slane %v187, 1
    %v189 = vadd.f32 %v187, %v188
    %v190 = vsel %vm106, %v164, 0.0
    %v191 = vrot.slane %v190, 4
    %v192 = vadd.f32 %v190, %v191
    %v193 = vrot.slane %v192, 2
    %v194 = vadd.f32 %v192, %v193
    %v195 = vrot.slane %v194, 1
    %v196 = vadd.f32 %v194, %v195
    %v201 = vrot.slane %v182, 7
    %v202 = vrot.slane %v189, 6
    %v203 = vrot.slane %v196, 5
    %v204 = vsel %vm142, %v175, %v201
    %v205 = vsel %vm144, %v202, %v203
    %v206 = vsel %vm146, %v204, %v205
    %v208 = vadd.f32 %v149, %v206
    %v209 = vlaneseq
    %vm210 = vcmp.ge.s32.totalorder %v209, 0
    %vm211 = vcmp.lt.s32.totalorder %v209, 512
    %vm212 = vmand %vm210, %vm211
    %213 = vst.msk [vmem:[#allocation2] sm:$0xf] %vm212, %v208
    // Predicated region
    $region18: #{regression_loss.1} parent=1 // pred_check
      %p214 = pneg %p75
    $region19: #{regression_loss.1} parent=1 // pred_check_branch
      %216 = sbr.rel (%p214) target = $region21
    $region20: #{regression_loss.1} parent=1 // pred_region
      %v217 = vld [vmem:[#allocation2] sm:$0xf]
      %v219 = vperm.slane %v217, 0
      %v220 = vperm.slane %v217, 1
      %v221 = vperm.slane %v217, 2
      %v222 = vperm.slane %v217, 3
      %v227 = vsel %vm142, %v219, 0.0
      %v228 = vsel %vm142, %v220, 0.0
      %v229 = vadd.f32 %v227, %v228
      %v230 = vsel %vm142, %v221, 0.0
      %v231 = vadd.f32 %v229, %v230
      %v232 = vsel %vm142, %v222, 0.0
      %v233 = vadd.f32 %v231, %v232
      %234 = vadd.xlane.f32.xlu0 %v233
      %v235 = vpop.xlane.xlu0 %234
      %v236 = vrot.slane %v235, 4
      %v237 = vadd.f32 %v235, %v236
      %v238 = vrot.slane %v237, 2
      %v239 = vadd.f32 %v237, %v238
      %v240 = vrot.slane %v239, 1
      %v241 = vadd.f32 %v239, %v240
      %s242 = vtos %v241
      %s243 = scalar_lea.smem [#allocation3], 0
      %244 = sst [smem:[%s243]] %s242
    $region21: #{regression_loss.1} parent=1 // pred_fallthru
      _
    // Predicated region
    $region22: #{regression_loss.1} parent=1 // pred_check
      _
    $region23: #{regression_loss.1} parent=1 // pred_check_branch
      %246 = sbr.rel (0) target = $region25
    $region24: #{regression_loss.1} parent=1 // pred_region
      %248 = vsyncadd [#allocation4], 0
      %s250 = sshll.u32 %s3, 4
      %s251 = int_to_ptr.hbm [resolvable:$true] %s250
      %253 = dma.smem_to_hbm [#allocation3], 16, %s251, [#allocation4]
    $region25: #{regression_loss.1} parent=1 // pred_fallthru
      _
    // Predicated region
    $region26: #{regression_loss.1} parent=1 // pred_check
      _
    $region27: #{regression_loss.1} parent=1 // pred_check_branch
      %255 = sbr.rel (0) target = $region29
    $region28: #{regression_loss.1} parent=1 // pred_region
      %257 = dma.done [#allocation4], 16
    $region29: #{regression_loss.1} parent=1 // pred_fallthru
      _
    %258 = sfence
    %259 = vsyncpa [#allocation4], 1

</llo_original>
